<compile_context>
chip_gen: v7x
topology: tpu7x:2x2x1
jax: 0.10.0
libtpu: 0.0.40
codegen_flags: <defaults>
</compile_context>

<pallas_src>
import functools

import jax
import jax.numpy as jnp
from jax import lax
from jax.experimental import pallas as pl
from jax.experimental.pallas import tpu as pltpu


def _masked_attn_kernel(x_ref, w_ref, o_ref, *, head_size, hp):
    # x_ref: (1, T, C) f32, w_ref: (C, 3*HP) bf16, o_ref: (1, T, HP) f32
    x = x_ref[0].astype(jnp.bfloat16)                                 # (T, C)

    # Fused Q|K|V projection: one MXU pass, 3*HP-wide (lane-dense) RHS.
    qkv = jnp.dot(x, w_ref[...], preferred_element_type=jnp.float32)  # (T, 3*HP)

    # Lane-aligned (multiple-of-128) slices; padded columns are zero.
    q = qkv[:, 0 * hp:1 * hp].astype(jnp.bfloat16)                    # (T, HP)
    k = qkv[:, 1 * hp:2 * hp].astype(jnp.bfloat16)                    # (T, HP)
    v = qkv[:, 2 * hp:3 * hp].astype(jnp.bfloat16)                    # (T, HP)

    # scores = q @ k^T / sqrt(head_size); contract last dims directly
    # (no explicit transpose -> no XLU shuffle). Zero-padded head columns
    # contribute nothing to the contraction.
    scale = 1.0 / (float(head_size) ** 0.5)
    scores = lax.dot_general(
        q, k, (((1,), (1,)), ((), ())),
        preferred_element_type=jnp.float32) * scale                   # (T, T)

    T = scores.shape[0]
    row = lax.broadcasted_iota(jnp.int32, (T, T), 0)
    col = lax.broadcasted_iota(jnp.int32, (T, T), 1)
    scores = jnp.where(col <= row, scores, -jnp.inf)                  # causal

    # Numerically-stable softmax, kept in f32 (VPU/EUP path; bf16 not used
    # here so the kernel also behaves well on v5e).
    m = jnp.max(scores, axis=-1, keepdims=True)
    p = jnp.exp(scores - m)
    denom = jnp.sum(p, axis=-1, keepdims=True)
    w_att = p * pl.reciprocal(denom, approx=True)

    out = jnp.dot(w_att.astype(jnp.bfloat16), v,
                  preferred_element_type=jnp.float32)                 # (T, HP)

    # Lane-dense (128-wide) unmasked store; real head occupies the first H lanes.
    o_ref[0] = out.astype(o_ref.dtype)


def masked_attention(x, wq_t, wk_t, wv_t):
    """x: (B, T, C) float32; w*_t: (C, H) float32 (transposed Linear weights)."""
    B, T, C = x.shape
    H = wq_t.shape[1]
    HP = max(128, ((H + 127) // 128) * 128)   # lane-dense head width

    def _pad_cols(w):
        return jnp.pad(w, ((0, 0), (0, HP - H)))

    # Fused, zero-padded, bf16 weight: (C, 3*HP). Padding columns are zero so
    # they contribute nothing to q/k contractions and leave zero output lanes.
    w_all = jnp.concatenate(
        [_pad_cols(wq_t), _pad_cols(wk_t), _pad_cols(wv_t)], axis=1
    ).astype(jnp.bfloat16)

    kernel = functools.partial(_masked_attn_kernel, head_size=H, hp=HP)

    cost = pl.CostEstimate(
        flops=2 * B * T * C * (3 * HP) + 2 * 2 * B * T * T * HP,
        transcendentals=B * T * T,
        bytes_accessed=x.size * 4 + w_all.size * 2 + B * T * HP * 4,
    )

    out_padded = pl.pallas_call(
        kernel,
        out_shape=jax.ShapeDtypeStruct((B, T, HP), x.dtype),
        grid_spec=pltpu.PrefetchScalarGridSpec(
            num_scalar_prefetch=0,
            grid=(B,),
            in_specs=[
                pl.BlockSpec((1, T, C), lambda b: (b, 0, 0)),
                pl.BlockSpec((C, 3 * HP), lambda b: (0, 0)),
            ],
            out_specs=pl.BlockSpec((1, T, HP), lambda b: (b, 0, 0)),
        ),
        compiler_params=pltpu.CompilerParams(
            dimension_semantics=("parallel",),
        ),
        cost_estimate=cost,
    )(x, w_all)

    return out_padded[..., :H]


def masked_attention_ref(x, wq_t, wk_t, wv_t):
    """Pure-JAX f32 reference matching the PyTorch forward (dropout in eval)."""
    q = x @ wq_t
    k = x @ wk_t
    v = x @ wv_t
    H = q.shape[-1]
    scores = jnp.einsum("btd,bsd->bts", q, k) / (H ** 0.5)
    T = x.shape[1]
    mask = jnp.tril(jnp.ones((T, T), dtype=bool))
    scores = jnp.where(mask[None, :, :], scores, -jnp.inf)
    w = jax.nn.softmax(scores, axis=-1)
    return jnp.einsum("bts,bsd->btd", w, v)


if __name__ == "__main__":
    # Small shapes consistent with the module (scaled down from
    # emb_size=1024, head_size=64, sequence_len=256), TPU-tile friendly.
    B, T, C, H = 2, 128, 256, 64

    key = jax.random.PRNGKey(0)
    kx, kq, kk, kv = jax.random.split(key, 4)

    x = jax.random.normal(kx, (B, T, C), dtype=jnp.float32)

    # nn.Linear(emb, head, bias=False).weight has shape (head, emb);
    # init deterministically and pre-transpose to (C, H).
    bound = 1.0 / (C ** 0.5)
    wq = jax.random.uniform(kq, (H, C), minval=-bound, maxval=bound, dtype=jnp.float32)
    wk = jax.random.uniform(kk, (H, C), minval=-bound, maxval=bound, dtype=jnp.float32)
    wv = jax.random.uniform(kv, (H, C), minval=-bound, maxval=bound, dtype=jnp.float32)

    out = masked_attention(x, wq.T, wk.T, wv.T)
    out = jax.block_until_ready(out)

    ref = masked_attention_ref(x, wq.T, wk.T, wv.T)
    assert out.shape == (B, T, H), out.shape
    # bf16 MXU operands + approx reciprocal -> relaxed tolerance vs f32 reference.
    max_err = float(jnp.max(jnp.abs(out - ref)))
    assert jnp.allclose(out, ref, atol=2e-2, rtol=2e-2), max_err

    print("KERNEL_OK")
</pallas_src>

<mosaic_0001>
module attributes {stable_mosaic.version = 11 : i64} {
  func.func @_masked_attn_kernel(%arg0: i32, %arg1: memref<1x128x256xf32, #tpu.memory_space<vmem>>, %arg2: memref<256x384xbf16, #tpu.memory_space<vmem>>, %arg3: memref<1x128x128xf32, #tpu.memory_space<vmem>>) attributes {dimension_semantics = [#tpu.dimension_semantics<parallel>], iteration_bounds = array<i64: 2>, scalar_prefetch = 0 : i64, scratch_operands = 0 : i64, tpu.core_type = #tpu.core_type<tc>, window_params = [{transform_indices = @transform_0, window_bounds = array<i64: 1, 128, 256>}, {pipeline_mode = #tpu.pipeline_mode<synchronous>, transform_indices = @transform_1, window_bounds = array<i64: 256, 384>}, {transform_indices = @transform_2, window_bounds = array<i64: 1, 128, 128>}]} {
    %c0 = arith.constant 0 : index
    %c0_0 = arith.constant 0 : index
    %c0_1 = arith.constant 0 : index
    %0 = vector.load %arg1[%c0, %c0_0, %c0_1] : memref<1x128x256xf32, #tpu.memory_space<vmem>>, vector<1x128x256xf32>
    %1 = vector.shape_cast %0 : vector<1x128x256xf32> to vector<128x256xf32>
    %2 = arith.truncf %1 : vector<128x256xf32> to vector<128x256xbf16>
    %c0_2 = arith.constant 0 : index
    %c0_3 = arith.constant 0 : index
    %3 = vector.load %arg2[%c0_2, %c0_3] : memref<256x384xbf16, #tpu.memory_space<vmem>>, vector<256x384xbf16>
    %cst = arith.constant dense<0.000000e+00> : vector<128x384xf32>
    %4 = tpu.matmul %2, %3, %cst {dimension_numbers = #tpu.dot_dimension_numbers<[1], [0], [0], [1], [0, 0, 1, 1], [], []>} : vector<128x256xbf16>, vector<256x384xbf16>, vector<128x384xf32> -> vector<128x384xf32>
    %5 = vector.extract_strided_slice %4 {offsets = [0, 0], sizes = [128, 128], strides = [1, 1]} : vector<128x384xf32> to vector<128x128xf32>
    %6 = arith.truncf %5 : vector<128x128xf32> to vector<128x128xbf16>
    %7 = vector.extract_strided_slice %4 {offsets = [0, 128], sizes = [128, 128], strides = [1, 1]} : vector<128x384xf32> to vector<128x128xf32>
    %8 = arith.truncf %7 : vector<128x128xf32> to vector<128x128xbf16>
    %9 = vector.extract_strided_slice %4 {offsets = [0, 256], sizes = [128, 128], strides = [1, 1]} : vector<128x384xf32> to vector<128x128xf32>
    %10 = arith.truncf %9 : vector<128x128xf32> to vector<128x128xbf16>
    %cst_4 = arith.constant dense<0.000000e+00> : vector<128x128xf32>
    %11 = tpu.matmul %6, %8, %cst_4 {dimension_numbers = #tpu.dot_dimension_numbers<[1], [1], [0], [0], [0, 0, 1, 0], [], []>} : vector<128x128xbf16>, vector<128x128xbf16>, vector<128x128xf32> -> vector<128x128xf32>
    %cst_5 = arith.constant 1.250000e-01 : f32
    %12 = vector.broadcast %cst_5 : f32 to vector<128x128xf32>
    %13 = arith.mulf %11, %12 : vector<128x128xf32>
    %14 = tpu.iota {dimensions = array<i32: 0>} : vector<128x128xi32>
    %15 = tpu.iota {dimensions = array<i32: 1>} : vector<128x128xi32>
    %16 = arith.cmpi sle, %15, %14 : vector<128x128xi32>
    %cst_6 = arith.constant 0xFF800000 : f32
    %17 = vector.broadcast %cst_6 : f32 to vector<128x128xf32>
    %18 = arith.select %16, %13, %17 : vector<128x128xi1>, vector<128x128xf32>
    %cst_7 = arith.constant dense<0xFF800000> : vector<128xf32>
    %19 = vector.multi_reduction <maximumf>, %18, %cst_7 [1] : vector<128x128xf32> to vector<128xf32>
    %20 = vector.shape_cast %19 : vector<128xf32> to vector<128x1xf32>
    %21 = vector.broadcast %20 : vector<128x1xf32> to vector<128x128xf32>
    %22 = arith.subf %18, %21 : vector<128x128xf32>
    %23 = math.exp %22 : vector<128x128xf32>
    %cst_8 = arith.constant dense<0.000000e+00> : vector<128xf32>
    %24 = vector.multi_reduction <add>, %23, %cst_8 [1] : vector<128x128xf32> to vector<128xf32>
    %25 = vector.shape_cast %24 : vector<128xf32> to vector<128x1xf32>
    %26 = tpu.reciprocal %25 {approx = true} : vector<128x1xf32> -> vector<128x1xf32>
    %27 = vector.broadcast %26 : vector<128x1xf32> to vector<128x128xf32>
    %28 = arith.mulf %23, %27 : vector<128x128xf32>
    %29 = arith.truncf %28 : vector<128x128xf32> to vector<128x128xbf16>
    %cst_9 = arith.constant dense<0.000000e+00> : vector<128x128xf32>
    %30 = tpu.matmul %29, %10, %cst_9 {dimension_numbers = #tpu.dot_dimension_numbers<[1], [0], [0], [1], [0, 0, 1, 1], [], []>} : vector<128x128xbf16>, vector<128x128xbf16>, vector<128x128xf32> -> vector<128x128xf32>
    %c0_10 = arith.constant 0 : index
    %c0_11 = arith.constant 0 : index
    %c0_12 = arith.constant 0 : index
    %31 = vector.load %arg3[%c0_10, %c0_11, %c0_12] : memref<1x128x128xf32, #tpu.memory_space<vmem>>, vector<1x128x128xf32>
    %32 = vector.shape_cast %31 : vector<1x128x128xf32> to vector<128x128xf32>
    %33 = vector.shape_cast %30 : vector<128x128xf32> to vector<1x128x128xf32>
    tpu.vector_store %arg3[%c0_10, %c0_11, %c0_12], %33 {strides = array<i32>} : memref<1x128x128xf32, #tpu.memory_space<vmem>>, vector<1x128x128xf32>,
    return
  }
  func.func @transform_0(%arg0: i32) -> (i32, i32, i32) {
    %c0_i32 = arith.constant 0 : i32
    %c0_i32_0 = arith.constant 0 : i32
    %c0_i32_1 = arith.constant 0 : i32
    return %arg0, %c0_i32, %c0_i32_0 : i32, i32, i32
  }
  func.func @transform_1(%arg0: i32) -> (i32, i32) {
    %c0_i32 = arith.constant 0 : i32
    %c0_i32_0 = arith.constant 0 : i32
    %c0_i32_1 = arith.constant 0 : i32
    return %c0_i32, %c0_i32_0 : i32, i32
  }
  func.func @transform_2(%arg0: i32) -> (i32, i32, i32) {
    %c0_i32 = arith.constant 0 : i32
    %c0_i32_0 = arith.constant 0 : i32
    %c0_i32_1 = arith.constant 0 : i32
    return %arg0, %c0_i32, %c0_i32_0 : i32, i32, i32
  }
}

</mosaic_0001>

<llo_original>
// kernel: tpu_custom_call.1
$region0: #{tpu_custom_call.1}
  #allocation0 [shape = 'u32[]', space=smem, size = 0x4, offset = 0x4, fixed_abs, tag = 'smem constant byte address 0x4 - core index']
  #allocation1 [shape = 'u32[144,128]{1,0:T(1,128)}', space=vmem, size = 0x12000, scoped, tag = 'internal scratch']
  %s0 = inlined_call_operand.hbm [shape: f32[2,128,256], index: 0, kind: input, shape index: {}]
  %s1 = inlined_call_operand.hbm [shape: bf16[256,384], index: 1, kind: input, shape index: {}]
  %s2 = inlined_call_operand.hbm [shape: f32[2,128,128], index: 2, kind: output, shape index: {}]
  %s3 = sld [smem:[#allocation0]]
  $region49: #{tpu_custom_call.1} parent=0
    _
  %s5 = ssub.s32 1, %s3
  %s6 = scalar_select 0, %s5, %s3
  $region1: #{tpu_custom_call.1} parent=0
    #allocation2 [shape = 'u8[262144]{0}', space=vmem, size = 0x40000, scoped, tag = 'input window, operand 0']
    #allocation3 [shape = 's32[2]{0}', space=sflag, size = 0x8, scoped, tag = 'scoped memory for tpu_custom_call.1']
    #allocation4 [shape = 's32[2]{0}', space=sflag, size = 0x8, scoped, tag = 'scoped memory for tpu_custom_call.1']
    #allocation5 [shape = 'u8[196608]{0}', space=vmem, size = 0x30000, scoped, tag = 'input window, operand 1, single buffered']
    #allocation6 [shape = 's32[1]{0}', space=sflag, size = 0x4, scoped, tag = 'scoped memory for tpu_custom_call.1']
    #allocation7 [shape = 'u8[131072]{0}', space=vmem, size = 0x20000, scoped, tag = 'output window, operand 0']
    %7 = vsyncpa [#allocation3], 0
    %s8 = scalar_lea.sflag [#allocation3], 1
    %9 = vsyncpa %s8, 0
    %10 = vsyncpa [#allocation6], 0
    %11 = vsyncpa [#allocation4], 0
    %s12 = scalar_lea.sflag [#allocation4], 1
    %13 = vsyncpa %s12, 0
    loop: start=0, step=1, limit=4
    $region2: #{tpu_custom_call.1} parent=1 // loop_pre_header
      _
    $region3: #{tpu_custom_call.1} parent=1 // loop_header
      %s15 = sphi 0, %s19
      %p16 = scmp.ge.s32.totalorder %s15, 4
      %s25 = sphi 0, %s27
      %s28 = sphi 0, %s25
      %s29 = sphi 0, %s28
      %s45 = sphi 0, %s29
      %s49 = sphi 0, %s49
      %s51 = sphi 0, %s49
      %s52 = sphi 0, %s51
      %s66 = sphi 0, %s52
      %s72 = sphi 0, %s74
      %s75 = sphi 0, %s72
      %s76 = sphi 0, %s75
      %s92 = sphi 0, %s76
    $region4: #{tpu_custom_call.1} parent=1 // loop_header_branch
      %18 = sbr.rel (%p16) target = $region8
    $region5: #{tpu_custom_call.1} parent=1 // loop_body
      %s20 = ssub.s32 %s15, 1
      %s21 = ssub.s32 %s15, 2
      %s22 = sadd.s32 %s15, 1
      %s23 = ssub.s32 %s15, %s22
      %p24 = scmp.eq.s32.totalorder %s23, 0
      %s26 = sadd.s32 %s25, 1
      %s27 = scalar_select %p24, %s25, %s26
      %p30 = pneg %p24
      %p31 = scmp.eq.s32.totalorder %s15, 1
      %p32 = por %p30, %p31
      %p33 = scmp.ne.s32.totalorder %s25, %s28
      %p34 = scmp.eq.s32.totalorder %s15, 0
      %p35 = por %p33, %p34
      %p36 = scmp.ne.s32.totalorder %s25, %s28
      %p37 = scmp.eq.s32.totalorder %s20, 1
      %p38 = por %p36, %p37
      %p39 = scmp.ne.s32.totalorder %s28, %s29
      %p40 = scmp.eq.s32.totalorder %s20, 0
      %p41 = por %p39, %p40
      %p42 = scmp.ne.s32.totalorder %s28, %s29
      %p43 = scmp.eq.s32.totalorder %s21, 1
      %p44 = por %p42, %p43
      %p46 = scmp.ne.s32.totalorder %s29, %s45
      %p47 = scmp.eq.s32.totalorder %s21, 0
      %p48 = por %p46, %p47
      %s50 = sadd.s32 %s49, 1
      %p53 = scmp.eq.s32.totalorder %s15, 1
      %p54 = scmp.ne.s32.totalorder %s49, %s51
      %p55 = scmp.eq.s32.totalorder %s15, 0
      %p56 = por %p54, %p55
      %p57 = scmp.ne.s32.totalorder %s49, %s51
      %p58 = scmp.eq.s32.totalorder %s20, 1
      %p59 = por %p57, %p58
      %p60 = scmp.ne.s32.totalorder %s51, %s52
      %p61 = scmp.eq.s32.totalorder %s20, 0
      %p62 = por %p60, %p61
      %p63 = scmp.ne.s32.totalorder %s51, %s52
      %p64 = scmp.eq.s32.totalorder %s21, 1
      %p65 = por %p63, %p64
      %p67 = scmp.ne.s32.totalorder %s52, %s66
      %p68 = scmp.eq.s32.totalorder %s21, 0
      %p69 = por %p67, %p68
      %s70 = ssub.s32 %s15, %s22
      %p71 = scmp.eq.s32.totalorder %s70, 0
      %s73 = sadd.s32 %s72, 1
      %s74 = scalar_select %p71, %s72, %s73
      %p77 = pneg %p71
      %p78 = scmp.eq.s32.totalorder %s15, 1
      %p79 = por %p77, %p78
      %p80 = scmp.ne.s32.totalorder %s72, %s75
      %p81 = scmp.eq.s32.totalorder %s15, 0
      %p82 = por %p80, %p81
      %p83 = scmp.ne.s32.totalorder %s72, %s75
      %p84 = scmp.eq.s32.totalorder %s20, 1
      %p85 = por %p83, %p84
      %p86 = scmp.ne.s32.totalorder %s75, %s76
      %p87 = scmp.eq.s32.totalorder %s20, 0
      %p88 = por %p86, %p87
      %p89 = scmp.ne.s32.totalorder %s75, %s76
      %p90 = scmp.eq.s32.totalorder %s21, 1
      %p91 = por %p89, %p90
      %p93 = scmp.ne.s32.totalorder %s76, %s92
      %p94 = scmp.eq.s32.totalorder %s21, 0
      %p95 = por %p93, %p94
      %p96 = scmp.le.s32.totalorder 1, %s15
      %p97 = scmp.lt.s32.totalorder %s15, 3
      %p98 = pnand %p96, %p97
      %p99 = pneg %p98
      // Predicated region
      $region9: #{tpu_custom_call.1} parent=5 // pred_check
        _
      $region10: #{tpu_custom_call.1} parent=5 // pred_check_branch
        %101 = sbr.rel (%p98) target = $region12
      $region11: #{tpu_custom_call.1} parent=5 // pred_region
        %s102 = ssub.s32 %s15, 1
        // Predicated region
        $region13: #{tpu_custom_call.1} parent=11 // pred_check
          %p103 = pneg %p62
        $region14: #{tpu_custom_call.1} parent=11 // pred_check_branch
          %105 = sbr.rel (%p103) target = $region16
        $region15: #{tpu_custom_call.1} parent=11 // pred_region
          %s107 = ssub.s32 6144, 6144
          %108 = vsyncadd [#allocation6], %s107
          %s109 = sshll.u32 [#allocation5], 4
          %s110 = int_to_ptr.vmem [resolvable:$true] %s109
          %115 = dma.hbm_to_vmem [thread:$0]  %s1, 6144, %s110, [#allocation6], 192, 192, 12
        $region16: #{tpu_custom_call.1} parent=11 // pred_fallthru
          _
      $region12: #{tpu_custom_call.1} parent=5 // pred_fallthru
        _
      %p116 = scmp.lt.s32.totalorder %s15, 2
      // Predicated region
      $region17: #{tpu_custom_call.1} parent=5 // pred_check
        %p117 = pneg %p116
      $region18: #{tpu_custom_call.1} parent=5 // pred_check_branch
        %119 = sbr.rel (%p117) target = $region20
      $region19: #{tpu_custom_call.1} parent=5 // pred_region
        // Predicated region
        $region21: #{tpu_custom_call.1} parent=19 // pred_check
          %p120 = pneg %p35
        $region22: #{tpu_custom_call.1} parent=19 // pred_check_branch
          %122 = sbr.rel (%p120) target = $region24
        $region23: #{tpu_custom_call.1} parent=19 // pred_region
          %s123 = sand.u32 %s25, 1
          %s124 = scalar_lea.sflag [#allocation3], %s123
          %s125 = sand.u32 %s25, 1
          %s126 = smul.addr %s125, 256
          %s127 = scalar_lea.vmem [#allocation2], %s126
          %s129 = ssub.s32 4096, 4096
          %130 = vsyncadd %s124, %s129
          %s131 = smul.addr %s15, 32
          %s132 = smul.addr %s131, 128
          %s133 = scalar_lea.hbm %s0, %s132
          %s134 = sshll.u32 %s127, 4
          %s135 = int_to_ptr.vmem [resolvable:$true] %s134
          %140 = dma.hbm_to_vmem [thread:$0]  %s133, 4096, %s135, %s124, 256, 256, 16
        $region24: #{tpu_custom_call.1} parent=19 // pred_fallthru
          _
      $region20: #{tpu_custom_call.1} parent=5 // pred_fallthru
        _
      %p141 = scmp.le.s32.totalorder 1, %s15
      %p142 = scmp.lt.s32.totalorder %s15, 3
      %p143 = pnand %p141, %p142
      %p144 = pneg %p143
      // Predicated region
      $region25: #{tpu_custom_call.1} parent=5 // pred_check
        _
      $region26: #{tpu_custom_call.1} parent=5 // pred_check_branch
        %146 = sbr.rel (%p143) target = $region28
      $region27: #{tpu_custom_call.1} parent=5 // pred_region
        %s147 = ssub.s32 %s15, 1
        %s148 = sand.u32 %s28, 1
        %s149 = scalar_lea.sflag [#allocation3], %s148
        %s150 = sand.u32 %s28, 1
        %s151 = smul.addr %s150, 256
        %s152 = scalar_lea.vmem [#allocation2], %s151
        // Predicated region
        $region29: #{tpu_custom_call.1} parent=27 // pred_check
          %p153 = pneg %p41
        $region30: #{tpu_custom_call.1} parent=27 // pred_check_branch
          %155 = sbr.rel (%p153) target = $region32
        $region31: #{tpu_custom_call.1} parent=27 // pred_region
          %156 = dma.done %s149, 4096
        $region32: #{tpu_custom_call.1} parent=27 // pred_fallthru
          _
        // Predicated region
        $region33: #{tpu_custom_call.1} parent=27 // pred_check
          %p157 = pneg %p62
        $region34: #{tpu_custom_call.1} parent=27 // pred_check_branch
          %159 = sbr.rel (%p157) target = $region36
        $region35: #{tpu_custom_call.1} parent=27 // pred_region
          %160 = dma.done [#allocation6], 6144
        $region36: #{tpu_custom_call.1} parent=27 // pred_fallthru
          _
        %s161 = sand.u32 %s28, 1
        %s162 = scalar_lea.sflag [#allocation3], %s161
        %s163 = sand.u32 %s28, 1
        %s164 = smul.addr %s163, 256
        %s165 = scalar_lea.vmem [#allocation2], %s164
        %p166 = pneg %p41
        %p167 = pneg %p38
        %p168 = pneg %p62
        %p169 = pneg %p59
        %p170 = pneg %p88
        %p171 = pneg %p85
        %s172 = sand.u32 %s75, 1
        %s173 = scalar_lea.sflag [#allocation4], %s172
        %s174 = sand.u32 %s75, 1
        %s175 = smul.addr %s174, 128
        %s176 = scalar_lea.vmem [#allocation7], %s175
        %v178 = vld [vmem:[%s152] sm:$0xff]
        %v179 = vld [vmem:[%s152 + $0x8] sm:$0xff]
        %v180 = vld [vmem:[%s152 + $0x10] sm:$0xff]
        %v181 = vld [vmem:[%s152 + $0x18] sm:$0xff]
        %v182 = vld [vmem:[%s152 + $0x20] sm:$0xff]
        %v183 = vld [vmem:[%s152 + $0x28] sm:$0xff]
        %v184 = vld [vmem:[%s152 + $0x30] sm:$0xff]
        %v185 = vld [vmem:[%s152 + $0x38] sm:$0xff]
        %v186 = vld [vmem:[%s152 + $0x40] sm:$0xff]
        %v187 = vld [vmem:[%s152 + $0x48] sm:$0xff]
        %v188 = vld [vmem:[%s152 + $0x50] sm:$0xff]
        %v189 = vld [vmem:[%s152 + $0x58] sm:$0xff]
        %v190 = vld [vmem:[%s152 + $0x60] sm:$0xff]
        %v191 = vld [vmem:[%s152 + $0x68] sm:$0xff]
        %v192 = vld [vmem:[%s152 + $0x70] sm:$0xff]
        %v193 = vld [vmem:[%s152 + $0x78] sm:$0xff]
        %v194 = vld [vmem:[%s152 + $0x80] sm:$0xff]
        %v195 = vld [vmem:[%s152 + $0x88] sm:$0xff]
        %v196 = vld [vmem:[%s152 + $0x90] sm:$0xff]
        %v197 = vld [vmem:[%s152 + $0x98] sm:$0xff]
        %v198 = vld [vmem:[%s152 + $0xa0] sm:$0xff]
        %v199 = vld [vmem:[%s152 + $0xa8] sm:$0xff]
        %v200 = vld [vmem:[%s152 + $0xb0] sm:$0xff]
        %v201 = vld [vmem:[%s152 + $0xb8] sm:$0xff]
        %v202 = vld [vmem:[%s152 + $0xc0] sm:$0xff]
        %v203 = vld [vmem:[%s152 + $0xc8] sm:$0xff]
        %v204 = vld [vmem:[%s152 + $0xd0] sm:$0xff]
        %v205 = vld [vmem:[%s152 + $0xd8] sm:$0xff]
        %v206 = vld [vmem:[%s152 + $0xe0] sm:$0xff]
        %v207 = vld [vmem:[%s152 + $0xe8] sm:$0xff]
        %v208 = vld [vmem:[%s152 + $0xf0] sm:$0xff]
        %v209 = vld [vmem:[%s152 + $0xf8] sm:$0xff]
        %v210 = vpack.c.bf16 %v180, %v178
        %v211 = vpack.c.bf16 %v181, %v179
        %v212 = vpack.c.bf16 %v184, %v182
        %v213 = vpack.c.bf16 %v185, %v183
        %v214 = vpack.c.bf16 %v188, %v186
        %v215 = vpack.c.bf16 %v189, %v187
        %v216 = vpack.c.bf16 %v192, %v190
        %v217 = vpack.c.bf16 %v193, %v191
        %v218 = vpack.c.bf16 %v196, %v194
        %v219 = vpack.c.bf16 %v197, %v195
        %v220 = vpack.c.bf16 %v200, %v198
        %v221 = vpack.c.bf16 %v201, %v199
        %v222 = vpack.c.bf16 %v204, %v202
        %v223 = vpack.c.bf16 %v205, %v203
        %v224 = vpack.c.bf16 %v208, %v206
        %v225 = vpack.c.bf16 %v209, %v207
        %v226 = vld [vmem:[#allocation5] sm:$0xff]
        %v227 = vld [vmem:[#allocation5 + $0x8] sm:$0xf]
        %v228 = vld [vmem:[#allocation5 + $0xc] sm:$0xff]
        %v229 = vld [vmem:[#allocation5 + $0x14] sm:$0xf]
        %v230 = vld [vmem:[#allocation5 + $0x18] sm:$0xff]
        %v231 = vld [vmem:[#allocation5 + $0x20] sm:$0xf]
        %v232 = vld [vmem:[#allocation5 + $0x24] sm:$0xff]
        %v233 = vld [vmem:[#allocation5 + $0x2c] sm:$0xf]
        %v234 = vld [vmem:[#allocation5 + $0x30] sm:$0xff]
        %v235 = vld [vmem:[#allocation5 + $0x38] sm:$0xf]
        %v236 = vld [vmem:[#allocation5 + $0x3c] sm:$0xff]
        %v237 = vld [vmem:[#allocation5 + $0x44] sm:$0xf]
        %v238 = vld [vmem:[#allocation5 + $0x48] sm:$0xff]
        %v239 = vld [vmem:[#allocation5 + $0x50] sm:$0xf]
        %v240 = vld [vmem:[#allocation5 + $0x54] sm:$0xff]
        %v241 = vld [vmem:[#allocation5 + $0x5c] sm:$0xf]
        %v242 = vld [vmem:[#allocation5 + $0x60] sm:$0xff]
        %v243 = vld [vmem:[#allocation5 + $0x68] sm:$0xf]
        %v244 = vld [vmem:[#allocation5 + $0x6c] sm:$0xff]
        %v245 = vld [vmem:[#allocation5 + $0x74] sm:$0xf]
        %v246 = vld [vmem:[#allocation5 + $0x78] sm:$0xff]
        %v247 = vld [vmem:[#allocation5 + $0x80] sm:$0xf]
        %v248 = vld [vmem:[#allocation5 + $0x84] sm:$0xff]
        %v249 = vld [vmem:[#allocation5 + $0x8c] sm:$0xf]
        %v250 = vld [vmem:[#allocation5 + $0x90] sm:$0xff]
        %v251 = vld [vmem:[#allocation5 + $0x98] sm:$0xf]
        %v252 = vld [vmem:[#allocation5 + $0x9c] sm:$0xff]
        %v253 = vld [vmem:[#allocation5 + $0xa4] sm:$0xf]
        %v254 = vld [vmem:[#allocation5 + $0xa8] sm:$0xff]
        %v255 = vld [vmem:[#allocation5 + $0xb0] sm:$0xf]
        %v256 = vld [vmem:[#allocation5 + $0xb4] sm:$0xff]
        %v257 = vld [vmem:[#allocation5 + $0xbc] sm:$0xf]
        %v258 = vld [vmem:[#allocation5 + $0xc0] sm:$0xff]
        %v259 = vld [vmem:[#allocation5 + $0xc8] sm:$0xf]
        %v260 = vld [vmem:[#allocation5 + $0xcc] sm:$0xff]
        %v261 = vld [vmem:[#allocation5 + $0xd4] sm:$0xf]
        %v262 = vld [vmem:[#allocation5 + $0xd8] sm:$0xff]
        %v263 = vld [vmem:[#allocation5 + $0xe0] sm:$0xf]
        %v264 = vld [vmem:[#allocation5 + $0xe4] sm:$0xff]
        %v265 = vld [vmem:[#allocation5 + $0xec] sm:$0xf]
        %v266 = vld [vmem:[#allocation5 + $0xf0] sm:$0xff]
        %v267 = vld [vmem:[#allocation5 + $0xf8] sm:$0xf]
        %v268 = vld [vmem:[#allocation5 + $0xfc] sm:$0xff]
        %v269 = vld [vmem:[#allocation5 + $0x104] sm:$0xf]
        %v270 = vld [vmem:[#allocation5 + $0x108] sm:$0xff]
        %v271 = vld [vmem:[#allocation5 + $0x110] sm:$0xf]
        %v272 = vld [vmem:[#allocation5 + $0x114] sm:$0xff]
        %v273 = vld [vmem:[#allocation5 + $0x11c] sm:$0xf]
        %v274 = vld [vmem:[#allocation5 + $0x120] sm:$0xff]
        %v275 = vld [vmem:[#allocation5 + $0x128] sm:$0xf]
        %v276 = vld [vmem:[#allocation5 + $0x12c] sm:$0xff]
        %v277 = vld [vmem:[#allocation5 + $0x134] sm:$0xf]
        %v278 = vld [vmem:[#allocation5 + $0x138] sm:$0xff]
        %v279 = vld [vmem:[#allocation5 + $0x140] sm:$0xf]
        %v280 = vld [vmem:[#allocation5 + $0x144] sm:$0xff]
        %v281 = vld [vmem:[#allocation5 + $0x14c] sm:$0xf]
        %v282 = vld [vmem:[#allocation5 + $0x150] sm:$0xff]
        %v283 = vld [vmem:[#allocation5 + $0x158] sm:$0xf]
        %v284 = vld [vmem:[#allocation5 + $0x15c] sm:$0xff]
        %v285 = vld [vmem:[#allocation5 + $0x164] sm:$0xf]
        %v286 = vld [vmem:[#allocation5 + $0x168] sm:$0xff]
        %v287 = vld [vmem:[#allocation5 + $0x170] sm:$0xf]
        %v288 = vld [vmem:[#allocation5 + $0x174] sm:$0xff]
        %v289 = vld [vmem:[#allocation5 + $0x17c] sm:$0xf]
        %v354 = vunpack.c.l.b16 %v226
        %v355 = vunpack.c.h.b16 %v226
        %v356 = vunpack.c.l.b16 %v227
        %v357 = vunpack.c.l.b16 %v228
        %v358 = vunpack.c.h.b16 %v228
        %v359 = vunpack.c.l.b16 %v229
        %v360 = vunpack.c.l.b16 %v230
        %v361 = vunpack.c.h.b16 %v230
        %v362 = vunpack.c.l.b16 %v231
        %v363 = vunpack.c.l.b16 %v232
        %v364 = vunpack.c.h.b16 %v232
        %v365 = vunpack.c.l.b16 %v233
        %v366 = vunpack.c.l.b16 %v234
        %v367 = vunpack.c.h.b16 %v234
        %v368 = vunpack.c.l.b16 %v235
        %v369 = vunpack.c.l.b16 %v236
        %v370 = vunpack.c.h.b16 %v236
        %v371 = vunpack.c.l.b16 %v237
        %v372 = vunpack.c.l.b16 %v238
        %v373 = vunpack.c.h.b16 %v238
        %v374 = vunpack.c.l.b16 %v239
        %v375 = vunpack.c.l.b16 %v240
        %v376 = vunpack.c.h.b16 %v240
        %v377 = vunpack.c.l.b16 %v241
        %v378 = vunpack.c.l.b16 %v242
        %v379 = vunpack.c.h.b16 %v242
        %v380 = vunpack.c.l.b16 %v243
        %v381 = vunpack.c.l.b16 %v244
        %v382 = vunpack.c.h.b16 %v244
        %v383 = vunpack.c.l.b16 %v245
        %v384 = vunpack.c.l.b16 %v246
        %v385 = vunpack.c.h.b16 %v246
        %v386 = vunpack.c.l.b16 %v247
        %v387 = vunpack.c.l.b16 %v248
        %v388 = vunpack.c.h.b16 %v248
        %v389 = vunpack.c.l.b16 %v249
        %v390 = vunpack.c.l.b16 %v250
        %v391 = vunpack.c.h.b16 %v250
        %v392 = vunpack.c.l.b16 %v251
        %v393 = vunpack.c.l.b16 %v252
        %v394 = vunpack.c.h.b16 %v252
        %v395 = vunpack.c.l.b16 %v253
        %v396 = vunpack.c.l.b16 %v254
        %v397 = vunpack.c.h.b16 %v254
        %v398 = vunpack.c.l.b16 %v255
        %v399 = vunpack.c.l.b16 %v256
        %v400 = vunpack.c.h.b16 %v256
        %v401 = vunpack.c.l.b16 %v257
        %v402 = vunpack.c.l.b16 %v258
        %v403 = vunpack.c.h.b16 %v258
        %v404 = vunpack.c.l.b16 %v259
        %v405 = vunpack.c.l.b16 %v260
        %v406 = vunpack.c.h.b16 %v260
        %v407 = vunpack.c.l.b16 %v261
        %v408 = vunpack.c.l.b16 %v262
        %v409 = vunpack.c.h.b16 %v262
        %v410 = vunpack.c.l.b16 %v263
        %v411 = vunpack.c.l.b16 %v264
        %v412 = vunpack.c.h.b16 %v264
        %v413 = vunpack.c.l.b16 %v265
        %v414 = vunpack.c.l.b16 %v266
        %v415 = vunpack.c.h.b16 %v266
        %v416 = vunpack.c.l.b16 %v267
        %v417 = vunpack.c.l.b16 %v268
        %v418 = vunpack.c.h.b16 %v268
        %v419 = vunpack.c.l.b16 %v269
        %v420 = vunpack.c.l.b16 %v270
        %v421 = vunpack.c.h.b16 %v270
        %v422 = vunpack.c.l.b16 %v271
        %v423 = vunpack.c.l.b16 %v272
        %v424 = vunpack.c.h.b16 %v272
        %v425 = vunpack.c.l.b16 %v273
        %v426 = vunpack.c.l.b16 %v274
        %v427 = vunpack.c.h.b16 %v274
        %v428 = vunpack.c.l.b16 %v275
        %v429 = vunpack.c.l.b16 %v276
        %v430 = vunpack.c.h.b16 %v276
        %v431 = vunpack.c.l.b16 %v277
        %v432 = vunpack.c.l.b16 %v278
        %v433 = vunpack.c.h.b16 %v278
        %v434 = vunpack.c.l.b16 %v279
        %v435 = vunpack.c.l.b16 %v280
        %v436 = vunpack.c.h.b16 %v280
        %v437 = vunpack.c.l.b16 %v281
        %v438 = vunpack.c.l.b16 %v282
        %v439 = vunpack.c.h.b16 %v282
        %v440 = vunpack.c.l.b16 %v283
        %v441 = vunpack.c.l.b16 %v284
        %v442 = vunpack.c.h.b16 %v284
        %v443 = vunpack.c.l.b16 %v285
        %v444 = vunpack.c.l.b16 %v286
        %v445 = vunpack.c.h.b16 %v286
        %v446 = vunpack.c.l.b16 %v287
        %v447 = vunpack.c.l.b16 %v288
        %v448 = vunpack.c.h.b16 %v288
        %v449 = vunpack.c.l.b16 %v289
        %v450 = vpack.c.b16 %v357, %v354
        %v451 = vpack.c.b16 %v358, %v355
        %v452 = vpack.c.b16 %v359, %v356
        %v453 = vpack.c.b16 %v363, %v360
        %v454 = vpack.c.b16 %v364, %v361
        %v455 = vpack.c.b16 %v365, %v362
        %v456 = vpack.c.b16 %v369, %v366
        %v457 = vpack.c.b16 %v370, %v367
        %v458 = vpack.c.b16 %v371, %v368
        %v459 = vpack.c.b16 %v375, %v372
        %v460 = vpack.c.b16 %v376, %v373
        %v461 = vpack.c.b16 %v377, %v374
        %v462 = vpack.c.b16 %v381, %v378
        %v463 = vpack.c.b16 %v382, %v379
        %v464 = vpack.c.b16 %v383, %v380
        %v465 = vpack.c.b16 %v387, %v384
        %v466 = vpack.c.b16 %v388, %v385
        %v467 = vpack.c.b16 %v389, %v386
        %v468 = vpack.c.b16 %v393, %v390
        %v469 = vpack.c.b16 %v394, %v391
        %v470 = vpack.c.b16 %v395, %v392
        %v471 = vpack.c.b16 %v399, %v396
        %v472 = vpack.c.b16 %v400, %v397
        %v473 = vpack.c.b16 %v401, %v398
        %v474 = vpack.c.b16 %v405, %v402
        %v475 = vpack.c.b16 %v406, %v403
        %v476 = vpack.c.b16 %v407, %v404
        %v477 = vpack.c.b16 %v411, %v408
        %v478 = vpack.c.b16 %v412, %v409
        %v479 = vpack.c.b16 %v413, %v410
        %v480 = vpack.c.b16 %v417, %v414
        %v481 = vpack.c.b16 %v418, %v415
        %v482 = vpack.c.b16 %v419, %v416
        %v483 = vpack.c.b16 %v423, %v420
        %v484 = vpack.c.b16 %v424, %v421
        %v485 = vpack.c.b16 %v425, %v422
        %v486 = vpack.c.b16 %v429, %v426
        %v487 = vpack.c.b16 %v430, %v427
        %v488 = vpack.c.b16 %v431, %v428
        %v489 = vpack.c.b16 %v435, %v432
        %v490 = vpack.c.b16 %v436, %v433
        %v491 = vpack.c.b16 %v437, %v434
        %v492 = vpack.c.b16 %v441, %v438
        %v493 = vpack.c.b16 %v442, %v439
        %v494 = vpack.c.b16 %v443, %v440
        %v495 = vpack.c.b16 %v447, %v444
        %v496 = vpack.c.b16 %v448, %v445
        %v497 = vpack.c.b16 %v449, %v446
        %546 = vmatprep.subr.bf16.mxu0 %v451
        %547 = vmatpush1.bf16.msra.mxu0 %v450
        %548 = vmatprep.subr.bf16.mxu0 %v454
        %549 = vmatpush1.bf16.msra.mxu0 %v453
        %550 = vmatprep.subr.bf16.mxu0 %v457
        %551 = vmatpush1.bf16.msra.mxu0 %v456
        %552 = vmatprep.subr.bf16.mxu0 %v460
        %553 = vmatpush1.bf16.msra.mxu0 %v459
        %554 = vmatprep.subr.bf16.mxu0 %v463
        %555 = vmatpush1.bf16.msra.mxu0 %v462
        %556 = vmatprep.subr.bf16.mxu0 %v466
        %557 = vmatpush1.bf16.msra.mxu0 %v465
        %558 = vmatprep.subr.bf16.mxu0 %v469
        %559 = vmatpush1.bf16.msra.mxu0 %v468
        %560 = vmatprep.subr.bf16.mxu0 %v472
        %561 = vmatpush1.bf16.msra.mxu0 %v471
        %562 = vmatprep.subr.bf16.mxu0 %v475
        %563 = vmatpush1.bf16.msra.mxu0 %v474
        %564 = vmatprep.subr.bf16.mxu0 %v478
        %565 = vmatpush1.bf16.msra.mxu0 %v477
        %566 = vmatprep.subr.bf16.mxu0 %v481
        %567 = vmatpush1.bf16.msra.mxu0 %v480
        %568 = vmatprep.subr.bf16.mxu0 %v484
        %569 = vmatpush1.bf16.msra.mxu0 %v483
        %570 = vmatprep.subr.bf16.mxu0 %v487
        %571 = vmatpush1.bf16.msra.mxu0 %v486
        %572 = vmatprep.subr.bf16.mxu0 %v490
        %573 = vmatpush1.bf16.msra.mxu0 %v489
        %574 = vmatprep.subr.bf16.mxu0 %v493
        %575 = vmatpush1.bf16.msra.mxu0 %v492
        %576 = vmatprep.subr.bf16.mxu0 %v496
        %577 = vmatpush1.bf16.msra.mxu0 %v495
        %578 = vmatprep.mubr.bf16.mxu0 %v211
        %579 = vmatmul.mubr.bf16.gmra.mrb[0].mxu0 %v210
        %v580 = vpop.f32.mrb[0].mxu0
        %v581 = vadd.f32 0.0, %v580
        %v582 = vpop.f32.mrb[0].mxu0
        %v583 = vadd.f32 0.0, %v582
        %v584 = vpop.f32.mrb[0].mxu0
        %v585 = vadd.f32 0.0, %v584
        %v586 = vpop.f32.mrb[0].mxu0
        %v587 = vadd.f32 0.0, %v586
        %588 = vmatprep.mubr.bf16.mxu0 %v213
        %589 = vmatmul.mubr.bf16.gmra.mrb[0].mxu0 %v212
        %v590 = vpop.f32.mrb[0].mxu0
        %v591 = vadd.f32 0.0, %v590
        %v592 = vpop.f32.mrb[0].mxu0
        %v593 = vadd.f32 0.0, %v592
        %v594 = vpop.f32.mrb[0].mxu0
        %v595 = vadd.f32 0.0, %v594
        %v596 = vpop.f32.mrb[0].mxu0
        %v597 = vadd.f32 0.0, %v596
        %598 = vmatprep.mubr.bf16.mxu0 %v215
        %599 = vmatmul.mubr.bf16.gmra.mrb[0].mxu0 %v214
        %v600 = vpop.f32.mrb[0].mxu0
        %v601 = vadd.f32 0.0, %v600
        %v602 = vpop.f32.mrb[0].mxu0
        %v603 = vadd.f32 0.0, %v602
        %v604 = vpop.f32.mrb[0].mxu0
        %v605 = vadd.f32 0.0, %v604
        %v606 = vpop.f32.mrb[0].mxu0
        %v607 = vadd.f32 0.0, %v606
        %608 = vmatprep.mubr.bf16.mxu0 %v217
        %609 = vmatmul.mubr.bf16.gmra.mrb[0].mxu0 %v216
        %v610 = vpop.f32.mrb[0].mxu0
        %v611 = vadd.f32 0.0, %v610
        %v612 = vpop.f32.mrb[0].mxu0
        %v613 = vadd.f32 0.0, %v612
        %v614 = vpop.f32.mrb[0].mxu0
        %v615 = vadd.f32 0.0, %v614
        %v616 = vpop.f32.mrb[0].mxu0
        %v617 = vadd.f32 0.0, %v616
        %618 = vmatprep.mubr.bf16.mxu0 %v219
        %619 = vmatmul.mubr.bf16.gmra.mrb[0].mxu0 %v218
        %v620 = vpop.f32.mrb[0].mxu0
        %v621 = vadd.f32 0.0, %v620
        %v622 = vpop.f32.mrb[0].mxu0
        %v623 = vadd.f32 0.0, %v622
        %v624 = vpop.f32.mrb[0].mxu0
        %v625 = vadd.f32 0.0, %v624
        %v626 = vpop.f32.mrb[0].mxu0
        %v627 = vadd.f32 0.0, %v626
        %628 = vmatprep.mubr.bf16.mxu0 %v221
        %629 = vmatmul.mubr.bf16.gmra.mrb[0].mxu0 %v220
        %v630 = vpop.f32.mrb[0].mxu0
        %v631 = vadd.f32 0.0, %v630
        %v632 = vpop.f32.mrb[0].mxu0
        %v633 = vadd.f32 0.0, %v632
        %v634 = vpop.f32.mrb[0].mxu0
        %v635 = vadd.f32 0.0, %v634
        %v636 = vpop.f32.mrb[0].mxu0
        %v637 = vadd.f32 0.0, %v636
        %638 = vmatprep.mubr.bf16.mxu0 %v223
        %639 = vmatmul.mubr.bf16.gmra.mrb[0].mxu0 %v222
        %v640 = vpop.f32.mrb[0].mxu0
        %v641 = vadd.f32 0.0, %v640
        %v642 = vpop.f32.mrb[0].mxu0
        %v643 = vadd.f32 0.0, %v642
        %v644 = vpop.f32.mrb[0].mxu0
        %v645 = vadd.f32 0.0, %v644
        %v646 = vpop.f32.mrb[0].mxu0
        %v647 = vadd.f32 0.0, %v646
        %648 = vmatprep.mubr.bf16.mxu0 %v225
        %649 = vmatmul.mubr.bf16.gmra.mrb[0].mxu0 %v224
        %v650 = vpop.f32.mrb[0].mxu0
        %v651 = vadd.f32 0.0, %v650
        %v652 = vpop.f32.mrb[0].mxu0
        %v653 = vadd.f32 0.0, %v652
        %v654 = vpop.f32.mrb[0].mxu0
        %v655 = vadd.f32 0.0, %v654
        %v656 = vpop.f32.mrb[0].mxu0
        %v657 = vadd.f32 0.0, %v656
        %658 = vdwg.mxu0
        %659 = vmatprep.subr.bf16.mxu0 0
        %660 = vmatpush1.bf16.msra.mxu0 %v452
        %661 = vmatprep.subr.bf16.mxu0 0
        %662 = vmatpush1.bf16.msra.mxu0 %v455
        %663 = vmatprep.subr.bf16.mxu0 0
        %664 = vmatpush1.bf16.msra.mxu0 %v458
        %665 = vmatprep.subr.bf16.mxu0 0
        %666 = vmatpush1.bf16.msra.mxu0 %v461
        %667 = vmatprep.subr.bf16.mxu0 0
        %668 = vmatpush1.bf16.msra.mxu0 %v464
        %669 = vmatprep.subr.bf16.mxu0 0
        %670 = vmatpush1.bf16.msra.mxu0 %v467
        %671 = vmatprep.subr.bf16.mxu0 0
        %672 = vmatpush1.bf16.msra.mxu0 %v470
        %673 = vmatprep.subr.bf16.mxu0 0
        %674 = vmatpush1.bf16.msra.mxu0 %v473
        %675 = vmatprep.subr.bf16.mxu0 0
        %676 = vmatpush1.bf16.msra.mxu0 %v476
        %677 = vmatprep.subr.bf16.mxu0 0
        %678 = vmatpush1.bf16.msra.mxu0 %v479
        %679 = vmatprep.subr.bf16.mxu0 0
        %680 = vmatpush1.bf16.msra.mxu0 %v482
        %681 = vmatprep.subr.bf16.mxu0 0
        %682 = vmatpush1.bf16.msra.mxu0 %v485
        %683 = vmatprep.subr.bf16.mxu0 0
        %684 = vmatpush1.bf16.msra.mxu0 %v488
        %685 = vmatprep.subr.bf16.mxu0 0
        %686 = vmatpush1.bf16.msra.mxu0 %v491
        %687 = vmatprep.subr.bf16.mxu0 0
        %688 = vmatpush1.bf16.msra.mxu0 %v494
        %689 = vmatprep.subr.bf16.mxu0 0
        %690 = vmatpush1.bf16.msra.mxu0 %v497
        %691 = vmatprep.mubr.bf16.mxu0 %v211
        %692 = vmatmul.mubr.bf16.gmra.mrb[0].mxu0 %v210
        %v693 = vpop.f32.mrb[0].mxu0
        %v694 = vadd.f32 0.0, %v693
        %v695 = vpop.f32.mrb[0].mxu0
        %v696 = vpop.f32.mrb[0].mxu0
        %v697 = vadd.f32 0.0, %v696
        %v698 = vpop.f32.mrb[0].mxu0
        %699 = vmatprep.mubr.bf16.mxu0 %v213
        %700 = vmatmul.mubr.bf16.gmra.mrb[0].mxu0 %v212
        %v701 = vpop.f32.mrb[0].mxu0
        %v702 = vadd.f32 0.0, %v701
        %v703 = vpop.f32.mrb[0].mxu0
        %v704 = vpop.f32.mrb[0].mxu0
        %v705 = vadd.f32 0.0, %v704
        %v706 = vpop.f32.mrb[0].mxu0
        %707 = vmatprep.mubr.bf16.mxu0 %v215
        %708 = vmatmul.mubr.bf16.gmra.mrb[0].mxu0 %v214
        %v709 = vpop.f32.mrb[0].mxu0
        %v710 = vadd.f32 0.0, %v709
        %v711 = vpop.f32.mrb[0].mxu0
        %v712 = vpop.f32.mrb[0].mxu0
        %v713 = vadd.f32 0.0, %v712
        %v714 = vpop.f32.mrb[0].mxu0
        %715 = vmatprep.mubr.bf16.mxu0 %v217
        %716 = vmatmul.mubr.bf16.gmra.mrb[0].mxu0 %v216
        %v717 = vpop.f32.mrb[0].mxu0
        %v718 = vadd.f32 0.0, %v717
        %v719 = vpop.f32.mrb[0].mxu0
        %v720 = vpop.f32.mrb[0].mxu0
        %v721 = vadd.f32 0.0, %v720
        %v722 = vpop.f32.mrb[0].mxu0
        %723 = vmatprep.mubr.bf16.mxu0 %v219
        %724 = vmatmul.mubr.bf16.gmra.mrb[0].mxu0 %v218
        %v725 = vpop.f32.mrb[0].mxu0
        %v726 = vadd.f32 0.0, %v725
        %v727 = vpop.f32.mrb[0].mxu0
        %v728 = vpop.f32.mrb[0].mxu0
        %v729 = vadd.f32 0.0, %v728
        %v730 = vpop.f32.mrb[0].mxu0
        %731 = vmatprep.mubr.bf16.mxu0 %v221
        %732 = vmatmul.mubr.bf16.gmra.mrb[0].mxu0 %v220
        %v733 = vpop.f32.mrb[0].mxu0
        %v734 = vadd.f32 0.0, %v733
        %v735 = vpop.f32.mrb[0].mxu0
        %v736 = vpop.f32.mrb[0].mxu0
        %v737 = vadd.f32 0.0, %v736
        %v738 = vpop.f32.mrb[0].mxu0
        %739 = vmatprep.mubr.bf16.mxu0 %v223
        %740 = vmatmul.mubr.bf16.gmra.mrb[0].mxu0 %v222
        %v741 = vpop.f32.mrb[0].mxu0
        %v742 = vadd.f32 0.0, %v741
        %v743 = vpop.f32.mrb[0].mxu0
        %v744 = vpop.f32.mrb[0].mxu0
        %v745 = vadd.f32 0.0, %v744
        %v746 = vpop.f32.mrb[0].mxu0
        %747 = vmatprep.mubr.bf16.mxu0 %v225
        %748 = vmatmul.mubr.bf16.gmra.mrb[0].mxu0 %v224
        %v749 = vpop.f32.mrb[0].mxu0
        %v750 = vadd.f32 0.0, %v749
        %v751 = vpop.f32.mrb[0].mxu0
        %v752 = vpop.f32.mrb[0].mxu0
        %v753 = vadd.f32 0.0, %v752
        %v754 = vpop.f32.mrb[0].mxu0
        %755 = vdwg.mxu0
        %v756 = vpack.c.bf16 %v585, %v581
        %v757 = vpack.c.bf16 %v595, %v591
        %v758 = vpack.c.bf16 %v605, %v601
        %v759 = vpack.c.bf16 %v615, %v611
        %v760 = vpack.c.bf16 %v625, %v621
        %v761 = vpack.c.bf16 %v635, %v631
        %v762 = vpack.c.bf16 %v645, %v641
        %v763 = vpack.c.bf16 %v655, %v651
        %v764 = vpack.c.bf16 %v587, %v583
        %v765 = vpack.c.bf16 %v597, %v593
        %v766 = vpack.c.bf16 %v607, %v603
        %v767 = vpack.c.bf16 %v617, %v613
        %v768 = vpack.c.bf16 %v627, %v623
        %v769 = vpack.c.bf16 %v637, %v633
        %v770 = vpack.c.bf16 %v647, %v643
        %v771 = vpack.c.bf16 %v657, %v653
        %v772 = vpack.c.bf16 %v697, %v694
        %v773 = vpack.c.bf16 %v705, %v702
        %v774 = vpack.c.bf16 %v713, %v710
        %v775 = vpack.c.bf16 %v721, %v718
        %v776 = vpack.c.bf16 %v729, %v726
        %v777 = vpack.c.bf16 %v737, %v734
        %v778 = vpack.c.bf16 %v745, %v742
        %v779 = vpack.c.bf16 %v753, %v750
        %780 = vmatprep.subr.bf16.mxu0 0
        %781 = vmatpush1.bf16.xpose.msra.mxu0 %v764
        %782 = vmatprep.subr.bf16.mxu0 0
        %783 = vmatpush1.bf16.xpose.msra.mxu0 %v765
        %784 = vmatprep.subr.bf16.mxu0 0
        %785 = vmatpush1.bf16.xpose.msra.mxu0 %v766
        %786 = vmatprep.subr.bf16.mxu0 0
        %787 = vmatpush1.bf16.xpose.msra.mxu0 %v767
        %788 = vmatprep.subr.bf16.mxu0 0
        %789 = vmatpush1.bf16.xpose.msra.mxu0 %v768
        %790 = vmatprep.subr.bf16.mxu0 0
        %791 = vmatpush1.bf16.xpose.msra.mxu0 %v769
        %792 = vmatprep.subr.bf16.mxu0 0
        %793 = vmatpush1.bf16.xpose.msra.mxu0 %v770
        %794 = vmatprep.subr.bf16.mxu0 0
        %795 = vmatpush1.bf16.xpose.msra.mxu0 %v771
        %796 = vmatprep.subr.bf16.mxu0 0
        %797 = vmatpush1.bf16.xpose.msra.mxu0 0
        %798 = vmatprep.subr.bf16.mxu0 0
        %799 = vmatpush1.bf16.xpose.msra.mxu0 0
        %800 = vmatprep.subr.bf16.mxu0 0
        %801 = vmatpush1.bf16.xpose.msra.mxu0 0
        %802 = vmatprep.subr.bf16.mxu0 0
        %803 = vmatpush1.bf16.xpose.msra.mxu0 0
        %804 = vmatprep.subr.bf16.mxu0 0
        %805 = vmatpush1.bf16.xpose.msra.mxu0 0
        %806 = vmatprep.subr.bf16.mxu0 0
        %807 = vmatpush1.bf16.xpose.msra.mxu0 0
        %808 = vmatprep.subr.bf16.mxu0 0
        %809 = vmatpush1.bf16.xpose.msra.mxu0 0
        %810 = vmatprep.subr.bf16.mxu0 0
        %811 = vmatpush1.bf16.xpose.msra.mxu0 0
        %812 = vmatprep.mubr.bf16.mxu0 0
        %813 = vmatmul.mubr.bf16.gmra.mrb[0].mxu0 %v756
        %v814 = vpop.f32.mrb[0].mxu0
        %v815 = vadd.f32 0.0, %v814
        %v816 = vpop.f32.mrb[0].mxu0
        %v817 = vpop.f32.mrb[0].mxu0
        %v818 = vadd.f32 0.0, %v817
        %v819 = vpop.f32.mrb[0].mxu0
        %820 = vmatprep.mubr.bf16.mxu0 0
        %821 = vmatmul.mubr.bf16.gmra.mrb[0].mxu0 %v757
        %v822 = vpop.f32.mrb[0].mxu0
        %v823 = vadd.f32 0.0, %v822
        %v824 = vpop.f32.mrb[0].mxu0
        %v825 = vpop.f32.mrb[0].mxu0
        %v826 = vadd.f32 0.0, %v825
        %v827 = vpop.f32.mrb[0].mxu0
        %828 = vmatprep.mubr.bf16.mxu0 0
        %829 = vmatmul.mubr.bf16.gmra.mrb[0].mxu0 %v758
        %v830 = vpop.f32.mrb[0].mxu0
        %v831 = vadd.f32 0.0, %v830
        %v832 = vpop.f32.mrb[0].mxu0
        %v833 = vpop.f32.mrb[0].mxu0
        %v834 = vadd.f32 0.0, %v833
        %v835 = vpop.f32.mrb[0].mxu0
        %836 = vmatprep.mubr.bf16.mxu0 0
        %837 = vmatmul.mubr.bf16.gmra.mrb[0].mxu0 %v759
        %v838 = vpop.f32.mrb[0].mxu0
        %v839 = vadd.f32 0.0, %v838
        %v840 = vpop.f32.mrb[0].mxu0
        %v841 = vpop.f32.mrb[0].mxu0
        %v842 = vadd.f32 0.0, %v841
        %v843 = vpop.f32.mrb[0].mxu0
        %844 = vmatprep.mubr.bf16.mxu0 0
        %845 = vmatmul.mubr.bf16.gmra.mrb[0].mxu0 %v760
        %v846 = vpop.f32.mrb[0].mxu0
        %v847 = vadd.f32 0.0, %v846
        %v848 = vpop.f32.mrb[0].mxu0
        %v849 = vpop.f32.mrb[0].mxu0
        %v850 = vadd.f32 0.0, %v849
        %v851 = vpop.f32.mrb[0].mxu0
        %852 = vmatprep.mubr.bf16.mxu0 0
        %853 = vmatmul.mubr.bf16.gmra.mrb[0].mxu0 %v761
        %v854 = vpop.f32.mrb[0].mxu0
        %v855 = vadd.f32 0.0, %v854
        %v856 = vpop.f32.mrb[0].mxu0
        %v857 = vpop.f32.mrb[0].mxu0
        %v858 = vadd.f32 0.0, %v857
        %v859 = vpop.f32.mrb[0].mxu0
        %860 = vmatprep.mubr.bf16.mxu0 0
        %861 = vmatmul.mubr.bf16.gmra.mrb[0].mxu0 %v762
        %v862 = vpop.f32.mrb[0].mxu0
        %v863 = vadd.f32 0.0, %v862
        %v864 = vpop.f32.mrb[0].mxu0
        %v865 = vpop.f32.mrb[0].mxu0
        %v866 = vadd.f32 0.0, %v865
        %v867 = vpop.f32.mrb[0].mxu0
        %868 = vmatprep.mubr.bf16.mxu0 0
        %869 = vmatmul.mubr.bf16.gmra.mrb[0].mxu0 %v763
        %v870 = vpop.f32.mrb[0].mxu0
        %v871 = vadd.f32 0.0, %v870
        %v872 = vpop.f32.mrb[0].mxu0
        %v873 = vpop.f32.mrb[0].mxu0
        %v874 = vadd.f32 0.0, %v873
        %v875 = vpop.f32.mrb[0].mxu0
        %876 = vdwg.mxu0
        %v877 = vmul.f32 %v815, 0.125
        %v878 = vmul.f32 %v818, 0.125
        %v879 = vmul.f32 %v823, 0.125
        %v880 = vmul.f32 %v826, 0.125
        %v881 = vmul.f32 %v831, 0.125
        %v882 = vmul.f32 %v834, 0.125
        %v883 = vmul.f32 %v839, 0.125
        %v884 = vmul.f32 %v842, 0.125
        %v885 = vmul.f32 %v847, 0.125
        %v886 = vmul.f32 %v850, 0.125
        %v887 = vmul.f32 %v855, 0.125
        %v888 = vmul.f32 %v858, 0.125
        %v889 = vmul.f32 %v863, 0.125
        %v890 = vmul.f32 %v866, 0.125
        %v891 = vmul.f32 %v871, 0.125
        %v892 = vmul.f32 %v874, 0.125
        %v893 = vlaneseq
        %v894 = vshrl.u32 %v893, 7
        %v895 = vadd.s32 %v894, 8
        %v896 = vadd.s32 %v894, 16
        %v897 = vadd.s32 %v894, 24
        %v898 = vadd.s32 %v894, 32
        %v899 = vadd.s32 %v894, 40
        %v900 = vadd.s32 %v894, 48
        %v901 = vadd.s32 %v894, 56
        %v902 = vadd.s32 %v894, 64
        %v903 = vadd.s32 %v894, 72
        %v904 = vadd.s32 %v894, 80
        %v905 = vadd.s32 %v894, 88
        %v906 = vadd.s32 %v894, 96
        %v907 = vadd.s32 %v894, 104
        %v908 = vadd.s32 %v894, 112
        %v909 = vadd.s32 %v894, 120
        %v910 = vlaneseq
        %v911 = vand.u32 %v910, 127
        %vm912 = vcmp.le.s32.totalorder %v911, %v894
        %vm913 = vcmp.le.s32.totalorder %v911, %v895
        %vm914 = vcmp.le.s32.totalorder %v911, %v896
        %vm915 = vcmp.le.s32.totalorder %v911, %v897
        %vm916 = vcmp.le.s32.totalorder %v911, %v898
        %vm917 = vcmp.le.s32.totalorder %v911, %v899
        %vm918 = vcmp.le.s32.totalorder %v911, %v900
        %vm919 = vcmp.le.s32.totalorder %v911, %v901
        %vm920 = vcmp.le.s32.totalorder %v911, %v902
        %vm921 = vcmp.le.s32.totalorder %v911, %v903
        %vm922 = vcmp.le.s32.totalorder %v911, %v904
        %vm923 = vcmp.le.s32.totalorder %v911, %v905
        %vm924 = vcmp.le.s32.totalorder %v911, %v906
        %vm925 = vcmp.le.s32.totalorder %v911, %v907
        %vm926 = vcmp.le.s32.totalorder %v911, %v908
        %vm927 = vcmp.le.s32.totalorder %v911, %v909
        %v928 = vsel %vm912, %v877, -inf
        %v929 = vsel %vm913, %v878, -inf
        %v930 = vsel %vm914, %v879, -inf
        %v931 = vsel %vm915, %v880, -inf
        %v932 = vsel %vm916, %v881, -inf
        %v933 = vsel %vm917, %v882, -inf
        %v934 = vsel %vm918, %v883, -inf
        %v935 = vsel %vm919, %v884, -inf
        %v936 = vsel %vm920, %v885, -inf
        %v937 = vsel %vm921, %v886, -inf
        %v938 = vsel %vm922, %v887, -inf
        %v939 = vsel %vm923, %v888, -inf
        %v940 = vsel %vm924, %v889, -inf
        %v941 = vsel %vm925, %v890, -inf
        %v942 = vsel %vm926, %v891, -inf
        %v943 = vsel %vm927, %v892, -inf
        %944 = vmax.xlane.f32.xlu0 %v928
        %v945 = vpop.xlane.xlu0 %944
        %946 = vmax.xlane.f32.xlu0 %v929
        %v947 = vpop.xlane.xlu0 %946
        %948 = vmax.xlane.f32.xlu0 %v930
        %v949 = vpop.xlane.xlu0 %948
        %950 = vmax.xlane.f32.xlu0 %v931
        %v951 = vpop.xlane.xlu0 %950
        %952 = vmax.xlane.f32.xlu0 %v932
        %v953 = vpop.xlane.xlu0 %952
        %954 = vmax.xlane.f32.xlu0 %v933
        %v955 = vpop.xlane.xlu0 %954
        %956 = vmax.xlane.f32.xlu0 %v934
        %v957 = vpop.xlane.xlu0 %956
        %958 = vmax.xlane.f32.xlu0 %v935
        %v959 = vpop.xlane.xlu0 %958
        %960 = vmax.xlane.f32.xlu0 %v936
        %v961 = vpop.xlane.xlu0 %960
        %962 = vmax.xlane.f32.xlu0 %v937
        %v963 = vpop.xlane.xlu0 %962
        %964 = vmax.xlane.f32.xlu0 %v938
        %v965 = vpop.xlane.xlu0 %964
        %966 = vmax.xlane.f32.xlu0 %v939
        %v967 = vpop.xlane.xlu0 %966
        %968 = vmax.xlane.f32.xlu0 %v940
        %v969 = vpop.xlane.xlu0 %968
        %970 = vmax.xlane.f32.xlu0 %v941
        %v971 = vpop.xlane.xlu0 %970
        %972 = vmax.xlane.f32.xlu0 %v942
        %v973 = vpop.xlane.xlu0 %972
        %974 = vmax.xlane.f32.xlu0 %v943
        %v975 = vpop.xlane.xlu0 %974
        %v976 = vsub.f32 %v928, %v945
        %v977 = vsub.f32 %v929, %v947
        %v978 = vsub.f32 %v930, %v949
        %v979 = vsub.f32 %v931, %v951
        %v980 = vsub.f32 %v932, %v953
        %v981 = vsub.f32 %v933, %v955
        %v982 = vsub.f32 %v934, %v957
        %v983 = vsub.f32 %v935, %v959
        %v984 = vsub.f32 %v936, %v961
        %v985 = vsub.f32 %v937, %v963
        %v986 = vsub.f32 %v938, %v965
        %v987 = vsub.f32 %v939, %v967
        %v988 = vsub.f32 %v940, %v969
        %v989 = vsub.f32 %v941, %v971
        %v990 = vsub.f32 %v942, %v973
        %v991 = vsub.f32 %v943, %v975
        %v992 = vmul.f32 %v976, 1.442695
        %v993 = vpow.pop %v992
        %v994 = vmul.f32 %v977, 1.442695
        %v995 = vpow.pop %v994
        %v996 = vmul.f32 %v978, 1.442695
        %v997 = vpow.pop %v996
        %v998 = vmul.f32 %v979, 1.442695
        %v999 = vpow.pop %v998
        %v1000 = vmul.f32 %v980, 1.442695
        %v1001 = vpow.pop %v1000
        %v1002 = vmul.f32 %v981, 1.442695
        %v1003 = vpow.pop %v1002
        %v1004 = vmul.f32 %v982, 1.442695
        %v1005 = vpow.pop %v1004
        %v1006 = vmul.f32 %v983, 1.442695
        %v1007 = vpow.pop %v1006
        %v1008 = vmul.f32 %v984, 1.442695
        %v1009 = vpow.pop %v1008
        %v1010 = vmul.f32 %v985, 1.442695
        %v1011 = vpow.pop %v1010
        %v1012 = vmul.f32 %v986, 1.442695
        %v1013 = vpow.pop %v1012
        %v1014 = vmul.f32 %v987, 1.442695
        %v1015 = vpow.pop %v1014
        %v1016 = vmul.f32 %v988, 1.442695
        %v1017 = vpow.pop %v1016
        %v1018 = vmul.f32 %v989, 1.442695
        %v1019 = vpow.pop %v1018
        %v1020 = vmul.f32 %v990, 1.442695
        %v1021 = vpow.pop %v1020
        %v1022 = vmul.f32 %v991, 1.442695
        %v1023 = vpow.pop %v1022
        %1024 = vadd.xlane.f32.xlu0 %v993
        %v1025 = vpop.xlane.xlu0 %1024
        %1026 = vadd.xlane.f32.xlu0 %v995
        %v1027 = vpop.xlane.xlu0 %1026
        %1028 = vadd.xlane.f32.xlu0 %v997
        %v1029 = vpop.xlane.xlu0 %1028
        %1030 = vadd.xlane.f32.xlu0 %v999
        %v1031 = vpop.xlane.xlu0 %1030
        %1032 = vadd.xlane.f32.xlu0 %v1001
        %v1033 = vpop.xlane.xlu0 %1032
        %1034 = vadd.xlane.f32.xlu0 %v1003
        %v1035 = vpop.xlane.xlu0 %1034
        %1036 = vadd.xlane.f32.xlu0 %v1005
        %v1037 = vpop.xlane.xlu0 %1036
        %1038 = vadd.xlane.f32.xlu0 %v1007
        %v1039 = vpop.xlane.xlu0 %1038
        %1040 = vadd.xlane.f32.xlu0 %v1009
        %v1041 = vpop.xlane.xlu0 %1040
        %1042 = vadd.xlane.f32.xlu0 %v1011
        %v1043 = vpop.xlane.xlu0 %1042
        %1044 = vadd.xlane.f32.xlu0 %v1013
        %v1045 = vpop.xlane.xlu0 %1044
        %1046 = vadd.xlane.f32.xlu0 %v1015
        %v1047 = vpop.xlane.xlu0 %1046
        %1048 = vadd.xlane.f32.xlu0 %v1017
        %v1049 = vpop.xlane.xlu0 %1048
        %1050 = vadd.xlane.f32.xlu0 %v1019
        %v1051 = vpop.xlane.xlu0 %1050
        %1052 = vadd.xlane.f32.xlu0 %v1021
        %v1053 = vpop.xlane.xlu0 %1052
        %1054 = vadd.xlane.f32.xlu0 %v1023
        %v1055 = vpop.xlane.xlu0 %1054
        %v1056 = vrcp.pop %v1025
        %v1057 = vrcp.pop %v1027
        %v1058 = vrcp.pop %v1029
        %v1059 = vrcp.pop %v1031
        %v1060 = vrcp.pop %v1033
        %v1061 = vrcp.pop %v1035
        %v1062 = vrcp.pop %v1037
        %v1063 = vrcp.pop %v1039
        %v1064 = vrcp.pop %v1041
        %v1065 = vrcp.pop %v1043
        %v1066 = vrcp.pop %v1045
        %v1067 = vrcp.pop %v1047
        %v1068 = vrcp.pop %v1049
        %v1069 = vrcp.pop %v1051
        %v1070 = vrcp.pop %v1053
        %v1071 = vrcp.pop %v1055
        %v1072 = vmul.f32 %v993, %v1056
        %v1073 = vmul.f32 %v995, %v1057
        %v1074 = vmul.f32 %v997, %v1058
        %v1075 = vmul.f32 %v999, %v1059
        %v1076 = vmul.f32 %v1001, %v1060
        %v1077 = vmul.f32 %v1003, %v1061
        %v1078 = vmul.f32 %v1005, %v1062
        %v1079 = vmul.f32 %v1007, %v1063
        %v1080 = vmul.f32 %v1009, %v1064
        %v1081 = vmul.f32 %v1011, %v1065
        %v1082 = vmul.f32 %v1013, %v1066
        %v1083 = vmul.f32 %v1015, %v1067
        %v1084 = vmul.f32 %v1017, %v1068
        %v1085 = vmul.f32 %v1019, %v1069
        %v1086 = vmul.f32 %v1021, %v1070
        %v1087 = vmul.f32 %v1023, %v1071
        %v1088 = vpack.c.bf16 %v1073, %v1072
        %v1089 = vpack.c.bf16 %v1075, %v1074
        %v1090 = vpack.c.bf16 %v1077, %v1076
        %v1091 = vpack.c.bf16 %v1079, %v1078
        %v1092 = vpack.c.bf16 %v1081, %v1080
        %v1093 = vpack.c.bf16 %v1083, %v1082
        %v1094 = vpack.c.bf16 %v1085, %v1084
        %v1095 = vpack.c.bf16 %v1087, %v1086
        %1096 = vmatprep.subr.bf16.mxu0 0
        %1097 = vmatpush1.bf16.msra.mxu0 %v772
        %1098 = vmatprep.subr.bf16.mxu0 0
        %1099 = vmatpush1.bf16.msra.mxu0 %v773
        %1100 = vmatprep.subr.bf16.mxu0 0
        %1101 = vmatpush1.bf16.msra.mxu0 %v774
        %1102 = vmatprep.subr.bf16.mxu0 0
        %1103 = vmatpush1.bf16.msra.mxu0 %v775
        %1104 = vmatprep.subr.bf16.mxu0 0
        %1105 = vmatpush1.bf16.msra.mxu0 %v776
        %1106 = vmatprep.subr.bf16.mxu0 0
        %1107 = vmatpush1.bf16.msra.mxu0 %v777
        %1108 = vmatprep.subr.bf16.mxu0 0
        %1109 = vmatpush1.bf16.msra.mxu0 %v778
        %1110 = vmatprep.subr.bf16.mxu0 0
        %1111 = vmatpush1.bf16.msra.mxu0 %v779
        %1112 = vmatprep.subr.bf16.mxu0 0
        %1113 = vmatpush1.bf16.msra.mxu0 0
        %1114 = vmatprep.subr.bf16.mxu0 0
        %1115 = vmatpush1.bf16.msra.mxu0 0
        %1116 = vmatprep.subr.bf16.mxu0 0
        %1117 = vmatpush1.bf16.msra.mxu0 0
        %1118 = vmatprep.subr.bf16.mxu0 0
        %1119 = vmatpush1.bf16.msra.mxu0 0
        %1120 = vmatprep.subr.bf16.mxu0 0
        %1121 = vmatpush1.bf16.msra.mxu0 0
        %1122 = vmatprep.subr.bf16.mxu0 0
        %1123 = vmatpush1.bf16.msra.mxu0 0
        %1124 = vmatprep.subr.bf16.mxu0 0
        %1125 = vmatpush1.bf16.msra.mxu0 0
        %1126 = vmatprep.subr.bf16.mxu0 0
        %1127 = vmatpush1.bf16.msra.mxu0 0
        %1128 = vmatprep.mubr.bf16.mxu0 0
        %1129 = vmatmul.mubr.bf16.gmra.mrb[0].mxu0 %v1088
        %v1130 = vpop.f32.mrb[0].mxu0
        %v1131 = vadd.f32 0.0, %v1130
        %v1132 = vpop.f32.mrb[0].mxu0
        %v1133 = vpop.f32.mrb[0].mxu0
        %v1134 = vadd.f32 0.0, %v1133
        %v1135 = vpop.f32.mrb[0].mxu0
        %1136 = vmatprep.mubr.bf16.mxu0 0
        %1137 = vmatmul.mubr.bf16.gmra.mrb[0].mxu0 %v1089
        %v1138 = vpop.f32.mrb[0].mxu0
        %v1139 = vadd.f32 0.0, %v1138
        %v1140 = vpop.f32.mrb[0].mxu0
        %v1141 = vpop.f32.mrb[0].mxu0
        %v1142 = vadd.f32 0.0, %v1141
        %v1143 = vpop.f32.mrb[0].mxu0
        %1144 = vmatprep.mubr.bf16.mxu0 0
        %1145 = vmatmul.mubr.bf16.gmra.mrb[0].mxu0 %v1090
        %v1146 = vpop.f32.mrb[0].mxu0
        %v1147 = vadd.f32 0.0, %v1146
        %v1148 = vpop.f32.mrb[0].mxu0
        %v1149 = vpop.f32.mrb[0].mxu0
        %v1150 = vadd.f32 0.0, %v1149
        %v1151 = vpop.f32.mrb[0].mxu0
        %1152 = vmatprep.mubr.bf16.mxu0 0
        %1153 = vmatmul.mubr.bf16.gmra.mrb[0].mxu0 %v1091
        %v1154 = vpop.f32.mrb[0].mxu0
        %v1155 = vadd.f32 0.0, %v1154
        %v1156 = vpop.f32.mrb[0].mxu0
        %v1157 = vpop.f32.mrb[0].mxu0
        %v1158 = vadd.f32 0.0, %v1157
        %v1159 = vpop.f32.mrb[0].mxu0
        %1160 = vmatprep.mubr.bf16.mxu0 0
        %1161 = vmatmul.mubr.bf16.gmra.mrb[0].mxu0 %v1092
        %v1162 = vpop.f32.mrb[0].mxu0
        %v1163 = vadd.f32 0.0, %v1162
        %v1164 = vpop.f32.mrb[0].mxu0
        %v1165 = vpop.f32.mrb[0].mxu0
        %v1166 = vadd.f32 0.0, %v1165
        %v1167 = vpop.f32.mrb[0].mxu0
        %1168 = vmatprep.mubr.bf16.mxu0 0
        %1169 = vmatmul.mubr.bf16.gmra.mrb[0].mxu0 %v1093
        %v1170 = vpop.f32.mrb[0].mxu0
        %v1171 = vadd.f32 0.0, %v1170
        %v1172 = vpop.f32.mrb[0].mxu0
        %v1173 = vpop.f32.mrb[0].mxu0
        %v1174 = vadd.f32 0.0, %v1173
        %v1175 = vpop.f32.mrb[0].mxu0
        %1176 = vmatprep.mubr.bf16.mxu0 0
        %1177 = vmatmul.mubr.bf16.gmra.mrb[0].mxu0 %v1094
        %v1178 = vpop.f32.mrb[0].mxu0
        %v1179 = vadd.f32 0.0, %v1178
        %v1180 = vpop.f32.mrb[0].mxu0
        %v1181 = vpop.f32.mrb[0].mxu0
        %v1182 = vadd.f32 0.0, %v1181
        %v1183 = vpop.f32.mrb[0].mxu0
        %1184 = vmatprep.mubr.bf16.mxu0 0
        %1185 = vmatmul.mubr.bf16.gmra.mrb[0].mxu0 %v1095
        %v1186 = vpop.f32.mrb[0].mxu0
        %v1187 = vadd.f32 0.0, %v1186
        %v1188 = vpop.f32.mrb[0].mxu0
        %v1189 = vpop.f32.mrb[0].mxu0
        %v1190 = vadd.f32 0.0, %v1189
        %v1191 = vpop.f32.mrb[0].mxu0
        %1192 = vdwg.mxu0
        %1193 = vst [vmem:[%s176] sm:$0xff] %v1131
        %1194 = vst [vmem:[%s176 + $0x8] sm:$0xff] %v1134
        %1195 = vst [vmem:[%s176 + $0x10] sm:$0xff] %v1139
        %1196 = vst [vmem:[%s176 + $0x18] sm:$0xff] %v1142
        %1197 = vst [vmem:[%s176 + $0x20] sm:$0xff] %v1147
        %1198 = vst [vmem:[%s176 + $0x28] sm:$0xff] %v1150
        %1199 = vst [vmem:[%s176 + $0x30] sm:$0xff] %v1155
        %1200 = vst [vmem:[%s176 + $0x38] sm:$0xff] %v1158
        %1201 = vst [vmem:[%s176 + $0x40] sm:$0xff] %v1163
        %1202 = vst [vmem:[%s176 + $0x48] sm:$0xff] %v1166
        %1203 = vst [vmem:[%s176 + $0x50] sm:$0xff] %v1171
        %1204 = vst [vmem:[%s176 + $0x58] sm:$0xff] %v1174
        %1205 = vst [vmem:[%s176 + $0x60] sm:$0xff] %v1179
        %1206 = vst [vmem:[%s176 + $0x68] sm:$0xff] %v1182
        %1207 = vst [vmem:[%s176 + $0x70] sm:$0xff] %v1187
        %1208 = vst [vmem:[%s176 + $0x78] sm:$0xff] %v1190
        %s1209 = sand.u32 %s75, 1
        %s1210 = scalar_lea.sflag [#allocation4], %s1209
        %s1211 = sand.u32 %s75, 1
        %s1212 = smul.addr %s1211, 128
        %s1213 = scalar_lea.vmem [#allocation7], %s1212
        // Predicated region
        $region37: #{tpu_custom_call.1} parent=27 // pred_check
          %p1214 = pneg %p85
        $region38: #{tpu_custom_call.1} parent=27 // pred_check_branch
          %1216 = sbr.rel (%p1214) target = $region40
        $region39: #{tpu_custom_call.1} parent=27 // pred_region
          %s1218 = ssub.s32 2048, 2048
          %1219 = vsyncadd %s1210, %s1218
          %s1220 = smul.addr %s20, 16
          %s1221 = smul.addr %s1220, 128
          %s1222 = scalar_lea.hbm %s2, %s1221
          %s1223 = sshll.u32 %s1213, 4
          %s1224 = int_to_ptr.vmem [resolvable:$true] %s1223
          %1229 = dma.vmem_to_hbm [thread:$0]  %s1224, 2048, %s1222, %s1210, 128, 128, 8
        $region40: #{tpu_custom_call.1} parent=27 // pred_fallthru
          _
      $region28: #{tpu_custom_call.1} parent=5 // pred_fallthru
        _
      %p1230 = scmp.le.s32.totalorder 2, %s15
      // Predicated region
      $region41: #{tpu_custom_call.1} parent=5 // pred_check
        %p1231 = pneg %p1230
      $region42: #{tpu_custom_call.1} parent=5 // pred_check_branch
        %1233 = sbr.rel (%p1231) target = $region44
      $region43: #{tpu_custom_call.1} parent=5 // pred_region
        %s1234 = ssub.s32 %s15, 2
        // Predicated region
        $region45: #{tpu_custom_call.1} parent=43 // pred_check
          %p1235 = pneg %p91
        $region46: #{tpu_custom_call.1} parent=43 // pred_check_branch
          %1237 = sbr.rel (%p1235) target = $region48
        $region47: #{tpu_custom_call.1} parent=43 // pred_region
          %s1238 = sand.u32 %s76, 1
          %s1239 = scalar_lea.sflag [#allocation4], %s1238
          %s1240 = sand.u32 %s76, 1
          %s1241 = smul.addr %s1240, 128
          %s1242 = scalar_lea.vmem [#allocation7], %s1241
          %1243 = dma.done %s1239, 2048
        $region48: #{tpu_custom_call.1} parent=43 // pred_fallthru
          _
      $region44: #{tpu_custom_call.1} parent=5 // pred_fallthru
        _
    $region6: #{tpu_custom_call.1} parent=1 // loop_footer
      %s19 = sadd.s32 1, %s15
    $region7: #{tpu_custom_call.1} parent=1 // loop_footer_branch
      %14 = sbr.rel target = $region3
    $region8: #{tpu_custom_call.1} parent=1 // loop_exit
      _
    %1244 = vsyncpa [#allocation3], 1
    %s1245 = scalar_lea.sflag [#allocation3], 1
    %1246 = vsyncpa %s1245, 1
    %1247 = vsyncpa [#allocation6], 1
    %1248 = vsyncpa [#allocation4], 1
    %s1249 = scalar_lea.sflag [#allocation4], 1
    %1250 = vsyncpa %s1249, 1

</llo_original>
